<compile_context>
chip_gen: v5e
topology: v5e:2x2
jax: 0.10.0
libtpu: 0.0.40
codegen_flags: <defaults>
</compile_context>

<pallas_src>
import functools

import jax
import jax.numpy as jnp
from jax.experimental import pallas as pl
from jax.experimental.pallas import tpu as pltpu

NEG_SLOPE = 0.01  # torch.nn.functional.leaky_relu default negative_slope

# Synthetic sizes consistent with the module's __init__
TRICK_INPUT_SIZE = 32   # stand-in for BoardData.TRICK_INPUT_SIZE
L1 = 32
L2 = 32
L3 = 32
OUT = 10


def _round_up(x, m):
    return ((x + m - 1) // m) * m


def _leaky_relu(v):
    return jnp.where(v >= 0, v, NEG_SLOPE * v)


def trick_mlp_kernel(x_ref,
                     w1_ref, b1_ref,
                     w2_ref, b2_ref,
                     w3_ref, b3_ref,
                     w4_ref, b4_ref,
                     o_ref):
    """Fused 4-layer MLP with leaky-relu between layers (dropout = identity).

    x arrives as f32 and is cast to bf16 on the VMEM tile; all matmuls use
    bf16 operands with f32 MXU accumulation; bias-add / leaky_relu are f32.
    Output block is the slim (tile, 10) f32 tile."""
    x = x_ref[...].astype(jnp.bfloat16)  # [tile_b, 32]

    h = jnp.dot(x, w1_ref[...], preferred_element_type=jnp.float32) + b1_ref[...]
    h = _leaky_relu(h)

    h = jnp.dot(h.astype(jnp.bfloat16), w2_ref[...],
                preferred_element_type=jnp.float32) + b2_ref[...]
    h = _leaky_relu(h)

    h = jnp.dot(h.astype(jnp.bfloat16), w3_ref[...],
                preferred_element_type=jnp.float32) + b3_ref[...]
    h = _leaky_relu(h)

    o_ref[...] = (jnp.dot(h.astype(jnp.bfloat16), w4_ref[...],
                          preferred_element_type=jnp.float32)
                  + b4_ref[...]).astype(o_ref.dtype)


def prepare_params(params):
    """One-time parameter prep (hoisted out of the per-call forward):
    weights -> bf16, biases -> f32.  Weights are [in, out], biases [1, out]."""
    prepped = {}
    for i in range(1, 5):
        prepped[f"w{i}"] = jnp.asarray(params[f"w{i}"], jnp.bfloat16)
        prepped[f"b{i}"] = jnp.asarray(params[f"b{i}"], jnp.float32)
    return prepped


@functools.partial(jax.jit, static_argnames=("tile_b",))
def brumaire_trick_forward(x, prepped, tile_b=4096):
    """x: [B, TRICK_INPUT_SIZE] float32.
    prepped: output of prepare_params (bf16 weights [in,out], f32 biases [1,out])."""
    B, in_dim = x.shape
    out_dim = prepped["b4"].shape[-1]

    # Batch tile: multiple of 8, capped so the grid length stays >= 2 for
    # B > 8 (both v7x TensorCores get work); no explicit batch padding —
    # pl.cdiv grid + Pallas ragged-block masking handle the tail.
    tile = max(8, min(_round_up(tile_b, 8), _round_up(pl.cdiv(B, 2), 8)))
    grid = (pl.cdiv(B, tile),)

    w1, b1 = prepped["w1"], prepped["b1"]
    w2, b2 = prepped["w2"], prepped["b2"]
    w3, b3 = prepped["w3"], prepped["b3"]
    w4, b4 = prepped["w4"], prepped["b4"]

    def rep2(i):  # weight/bias index map: same block for every batch tile
        return (0, 0)

    out = pl.pallas_call(
        trick_mlp_kernel,
        out_shape=jax.ShapeDtypeStruct((B, out_dim), jnp.float32),
        grid_spec=pltpu.PrefetchScalarGridSpec(
            num_scalar_prefetch=0,
            grid=grid,
            in_specs=[
                pl.BlockSpec((tile, in_dim), lambda i: (i, 0)),
                pl.BlockSpec(w1.shape, rep2),
                pl.BlockSpec(b1.shape, rep2),
                pl.BlockSpec(w2.shape, rep2),
                pl.BlockSpec(b2.shape, rep2),
                pl.BlockSpec(w3.shape, rep2),
                pl.BlockSpec(b3.shape, rep2),
                pl.BlockSpec(w4.shape, rep2),
                pl.BlockSpec(b4.shape, rep2),
            ],
            out_specs=pl.BlockSpec((tile, out_dim), lambda i: (i, 0)),
        ),
        compiler_params=pltpu.CompilerParams(
            dimension_semantics=("parallel",)),
    )(x, w1, b1, w2, b2, w3, b3, w4, b4)

    return out


def init_params(key):
    """Deterministic init matching torch.nn.Linear shapes.
    torch Linear(in, out): weight [out, in], bias [out], U(-1/sqrt(in), 1/sqrt(in)).
    We store weights pre-transposed to [in, out] and biases as [1, out]."""
    dims = [(TRICK_INPUT_SIZE, L1), (L1, L2), (L2, L3), (L3, OUT)]
    params = {}
    for idx, (fan_in, fan_out) in enumerate(dims, start=1):
        key, kw, kb = jax.random.split(key, 3)
        bound = 1.0 / jnp.sqrt(jnp.float32(fan_in))
        w = jax.random.uniform(kw, (fan_out, fan_in), jnp.float32, -bound, bound)
        b = jax.random.uniform(kb, (fan_out,), jnp.float32, -bound, bound)
        params[f"w{idx}"] = w.T                      # [in, out]
        params[f"b{idx}"] = b.reshape(1, fan_out)    # [1, out]
    return params


def reference_forward_bf16(x, params):
    """Pure-JAX reference matching the kernel math (bf16 matmul operands,
    f32 accumulation, f32 bias/activation)."""
    def lin(h, w, b):
        return jnp.dot(h.astype(jnp.bfloat16), w.astype(jnp.bfloat16),
                       preferred_element_type=jnp.float32) + b
    h = _leaky_relu(lin(x, params["w1"], params["b1"]))
    h = _leaky_relu(lin(h, params["w2"], params["b2"]))
    h = _leaky_relu(lin(h, params["w3"], params["b3"]))
    return lin(h, params["w4"], params["b4"])


def reference_forward_f32(x, params):
    """Pure-f32 reference (same math as the PyTorch module in eval mode)."""
    h = _leaky_relu(x @ params["w1"] + params["b1"])
    h = _leaky_relu(h @ params["w2"] + params["b2"])
    h = _leaky_relu(h @ params["w3"] + params["b3"])
    return h @ params["w4"] + params["b4"]


if __name__ == "__main__":
    key = jax.random.PRNGKey(0)
    key, kx = jax.random.split(key)

    # Small batch; 37 deliberately exercises the ragged-last-block (masked
    # tail) path as well as the grid-length-2 cap.
    B = 37
    x = jax.random.normal(kx, (B, TRICK_INPUT_SIZE), jnp.float32)
    params = init_params(key)
    prepped = prepare_params(params)

    out = brumaire_trick_forward(x, prepped, tile_b=4096)
    out = jax.block_until_ready(out)
    assert out.shape == (B, OUT)

    # Exact-math check against a bf16-matched reference.
    ref_bf16 = reference_forward_bf16(x, params)
    assert jnp.allclose(out, ref_bf16, atol=1e-4, rtol=1e-4), (
        jnp.max(jnp.abs(out - ref_bf16)))

    # Sanity check against the pure-f32 PyTorch-equivalent math.
    ref_f32 = reference_forward_f32(x, params)
    assert jnp.allclose(out, ref_f32, atol=5e-2, rtol=5e-2), (
        jnp.max(jnp.abs(out - ref_f32)))

    print("KERNEL_OK")
</pallas_src>

<mosaic_0001>
module attributes {stable_mosaic.version = 11 : i64} {
  func.func @trick_mlp_kernel(%arg0: i32, %arg1: memref<24x32xf32, #tpu.memory_space<vmem>>, %arg2: memref<32x32xbf16, #tpu.memory_space<vmem>>, %arg3: memref<1x32xf32, #tpu.memory_space<vmem>>, %arg4: memref<32x32xbf16, #tpu.memory_space<vmem>>, %arg5: memref<1x32xf32, #tpu.memory_space<vmem>>, %arg6: memref<32x32xbf16, #tpu.memory_space<vmem>>, %arg7: memref<1x32xf32, #tpu.memory_space<vmem>>, %arg8: memref<32x10xbf16, #tpu.memory_space<vmem>>, %arg9: memref<1x10xf32, #tpu.memory_space<vmem>>, %arg10: memref<24x10xf32, #tpu.memory_space<vmem>>) attributes {dimension_semantics = [#tpu.dimension_semantics<parallel>], iteration_bounds = array<i64: 2>, scalar_prefetch = 0 : i64, scratch_operands = 0 : i64, tpu.core_type = #tpu.core_type<tc>, window_params = [{transform_indices = @transform_0, window_bounds = array<i64: 24, 32>}, {pipeline_mode = #tpu.pipeline_mode<synchronous>, transform_indices = @transform_1, window_bounds = array<i64: 32, 32>}, {pipeline_mode = #tpu.pipeline_mode<synchronous>, transform_indices = @transform_2, window_bounds = array<i64: 1, 32>}, {pipeline_mode = #tpu.pipeline_mode<synchronous>, transform_indices = @transform_3, window_bounds = array<i64: 32, 32>}, {pipeline_mode = #tpu.pipeline_mode<synchronous>, transform_indices = @transform_4, window_bounds = array<i64: 1, 32>}, {pipeline_mode = #tpu.pipeline_mode<synchronous>, transform_indices = @transform_5, window_bounds = array<i64: 32, 32>}, {pipeline_mode = #tpu.pipeline_mode<synchronous>, transform_indices = @transform_6, window_bounds = array<i64: 1, 32>}, {pipeline_mode = #tpu.pipeline_mode<synchronous>, transform_indices = @transform_7, window_bounds = array<i64: 32, 10>}, {pipeline_mode = #tpu.pipeline_mode<synchronous>, transform_indices = @transform_8, window_bounds = array<i64: 1, 10>}, {transform_indices = @transform_9, window_bounds = array<i64: 24, 10>}]} {
    %c0 = arith.constant 0 : index
    %c0_0 = arith.constant 0 : index
    %0 = vector.load %arg1[%c0, %c0_0] : memref<24x32xf32, #tpu.memory_space<vmem>>, vector<24x32xf32>
    %1 = arith.truncf %0 : vector<24x32xf32> to vector<24x32xbf16>
    %c0_1 = arith.constant 0 : index
    %c0_2 = arith.constant 0 : index
    %2 = vector.load %arg2[%c0_1, %c0_2] : memref<32x32xbf16, #tpu.memory_space<vmem>>, vector<32x32xbf16>
    %cst = arith.constant dense<0.000000e+00> : vector<24x32xf32>
    %3 = tpu.matmul %1, %2, %cst {dimension_numbers = #tpu.dot_dimension_numbers<[1], [0], [0], [1], [0, 0, 1, 1], [], []>} : vector<24x32xbf16>, vector<32x32xbf16>, vector<24x32xf32> -> vector<24x32xf32>
    %c0_3 = arith.constant 0 : index
    %c0_4 = arith.constant 0 : index
    %4 = vector.load %arg3[%c0_3, %c0_4] : memref<1x32xf32, #tpu.memory_space<vmem>>, vector<1x32xf32>
    %5 = vector.broadcast %4 : vector<1x32xf32> to vector<24x32xf32>
    %6 = arith.addf %3, %5 : vector<24x32xf32>
    %cst_5 = arith.constant 0.000000e+00 : f32
    %7 = vector.broadcast %cst_5 : f32 to vector<24x32xf32>
    %8 = arith.cmpf oge, %6, %7 : vector<24x32xf32>
    %cst_6 = arith.constant 0.00999999977 : f32
    %9 = vector.broadcast %cst_6 : f32 to vector<24x32xf32>
    %10 = arith.mulf %9, %6 : vector<24x32xf32>
    %11 = arith.select %8, %6, %10 : vector<24x32xi1>, vector<24x32xf32>
    %12 = arith.truncf %11 : vector<24x32xf32> to vector<24x32xbf16>
    %c0_7 = arith.constant 0 : index
    %c0_8 = arith.constant 0 : index
    %13 = vector.load %arg4[%c0_7, %c0_8] : memref<32x32xbf16, #tpu.memory_space<vmem>>, vector<32x32xbf16>
    %cst_9 = arith.constant dense<0.000000e+00> : vector<24x32xf32>
    %14 = tpu.matmul %12, %13, %cst_9 {dimension_numbers = #tpu.dot_dimension_numbers<[1], [0], [0], [1], [0, 0, 1, 1], [], []>} : vector<24x32xbf16>, vector<32x32xbf16>, vector<24x32xf32> -> vector<24x32xf32>
    %c0_10 = arith.constant 0 : index
    %c0_11 = arith.constant 0 : index
    %15 = vector.load %arg5[%c0_10, %c0_11] : memref<1x32xf32, #tpu.memory_space<vmem>>, vector<1x32xf32>
    %16 = vector.broadcast %15 : vector<1x32xf32> to vector<24x32xf32>
    %17 = arith.addf %14, %16 : vector<24x32xf32>
    %cst_12 = arith.constant 0.000000e+00 : f32
    %18 = vector.broadcast %cst_12 : f32 to vector<24x32xf32>
    %19 = arith.cmpf oge, %17, %18 : vector<24x32xf32>
    %cst_13 = arith.constant 0.00999999977 : f32
    %20 = vector.broadcast %cst_13 : f32 to vector<24x32xf32>
    %21 = arith.mulf %20, %17 : vector<24x32xf32>
    %22 = arith.select %19, %17, %21 : vector<24x32xi1>, vector<24x32xf32>
    %23 = arith.truncf %22 : vector<24x32xf32> to vector<24x32xbf16>
    %c0_14 = arith.constant 0 : index
    %c0_15 = arith.constant 0 : index
    %24 = vector.load %arg6[%c0_14, %c0_15] : memref<32x32xbf16, #tpu.memory_space<vmem>>, vector<32x32xbf16>
    %cst_16 = arith.constant dense<0.000000e+00> : vector<24x32xf32>
    %25 = tpu.matmul %23, %24, %cst_16 {dimension_numbers = #tpu.dot_dimension_numbers<[1], [0], [0], [1], [0, 0, 1, 1], [], []>} : vector<24x32xbf16>, vector<32x32xbf16>, vector<24x32xf32> -> vector<24x32xf32>
    %c0_17 = arith.constant 0 : index
    %c0_18 = arith.constant 0 : index
    %26 = vector.load %arg7[%c0_17, %c0_18] : memref<1x32xf32, #tpu.memory_space<vmem>>, vector<1x32xf32>
    %27 = vector.broadcast %26 : vector<1x32xf32> to vector<24x32xf32>
    %28 = arith.addf %25, %27 : vector<24x32xf32>
    %cst_19 = arith.constant 0.000000e+00 : f32
    %29 = vector.broadcast %cst_19 : f32 to vector<24x32xf32>
    %30 = arith.cmpf oge, %28, %29 : vector<24x32xf32>
    %cst_20 = arith.constant 0.00999999977 : f32
    %31 = vector.broadcast %cst_20 : f32 to vector<24x32xf32>
    %32 = arith.mulf %31, %28 : vector<24x32xf32>
    %33 = arith.select %30, %28, %32 : vector<24x32xi1>, vector<24x32xf32>
    %34 = arith.truncf %33 : vector<24x32xf32> to vector<24x32xbf16>
    %c0_21 = arith.constant 0 : index
    %c0_22 = arith.constant 0 : index
    %35 = vector.load %arg8[%c0_21, %c0_22] : memref<32x10xbf16, #tpu.memory_space<vmem>>, vector<32x10xbf16>
    %cst_23 = arith.constant dense<0.000000e+00> : vector<24x10xf32>
    %36 = tpu.matmul %34, %35, %cst_23 {dimension_numbers = #tpu.dot_dimension_numbers<[1], [0], [0], [1], [0, 0, 1, 1], [], []>} : vector<24x32xbf16>, vector<32x10xbf16>, vector<24x10xf32> -> vector<24x10xf32>
    %c0_24 = arith.constant 0 : index
    %c0_25 = arith.constant 0 : index
    %37 = vector.load %arg9[%c0_24, %c0_25] : memref<1x10xf32, #tpu.memory_space<vmem>>, vector<1x10xf32>
    %38 = vector.broadcast %37 : vector<1x10xf32> to vector<24x10xf32>
    %39 = arith.addf %36, %38 : vector<24x10xf32>
    %c0_26 = arith.constant 0 : index
    %c0_27 = arith.constant 0 : index
    %40 = vector.load %arg10[%c0_26, %c0_27] : memref<24x10xf32, #tpu.memory_space<vmem>>, vector<24x10xf32>
    tpu.vector_store %arg10[%c0_26, %c0_27], %39 {strides = array<i32>} : memref<24x10xf32, #tpu.memory_space<vmem>>, vector<24x10xf32>,
    return
  }
  func.func @transform_0(%arg0: i32) -> (i32, i32) {
    %c0_i32 = arith.constant 0 : i32
    %c0_i32_0 = arith.constant 0 : i32
    return %arg0, %c0_i32 : i32, i32
  }
  func.func @transform_1(%arg0: i32) -> (i32, i32) {
    %c0_i32 = arith.constant 0 : i32
    %c0_i32_0 = arith.constant 0 : i32
    %c0_i32_1 = arith.constant 0 : i32
    return %c0_i32, %c0_i32_0 : i32, i32
  }
  func.func @transform_2(%arg0: i32) -> (i32, i32) {
    %c0_i32 = arith.constant 0 : i32
    %c0_i32_0 = arith.constant 0 : i32
    %c0_i32_1 = arith.constant 0 : i32
    return %c0_i32, %c0_i32_0 : i32, i32
  }
  func.func @transform_3(%arg0: i32) -> (i32, i32) {
    %c0_i32 = arith.constant 0 : i32
    %c0_i32_0 = arith.constant 0 : i32
    %c0_i32_1 = arith.constant 0 : i32
    return %c0_i32, %c0_i32_0 : i32, i32
  }
  func.func @transform_4(%arg0: i32) -> (i32, i32) {
    %c0_i32 = arith.constant 0 : i32
    %c0_i32_0 = arith.constant 0 : i32
    %c0_i32_1 = arith.constant 0 : i32
    return %c0_i32, %c0_i32_0 : i32, i32
  }
  func.func @transform_5(%arg0: i32) -> (i32, i32) {
    %c0_i32 = arith.constant 0 : i32
    %c0_i32_0 = arith.constant 0 : i32
    %c0_i32_1 = arith.constant 0 : i32
    return %c0_i32, %c0_i32_0 : i32, i32
  }
  func.func @transform_6(%arg0: i32) -> (i32, i32) {
    %c0_i32 = arith.constant 0 : i32
    %c0_i32_0 = arith.constant 0 : i32
    %c0_i32_1 = arith.constant 0 : i32
    return %c0_i32, %c0_i32_0 : i32, i32
  }
  func.func @transform_7(%arg0: i32) -> (i32, i32) {
    %c0_i32 = arith.constant 0 : i32
    %c0_i32_0 = arith.constant 0 : i32
    %c0_i32_1 = arith.constant 0 : i32
    return %c0_i32, %c0_i32_0 : i32, i32
  }
  func.func @transform_8(%arg0: i32) -> (i32, i32) {
    %c0_i32 = arith.constant 0 : i32
    %c0_i32_0 = arith.constant 0 : i32
    %c0_i32_1 = arith.constant 0 : i32
    return %c0_i32, %c0_i32_0 : i32, i32
  }
  func.func @transform_9(%arg0: i32) -> (i32, i32) {
    %c0_i32 = arith.constant 0 : i32
    %c0_i32_0 = arith.constant 0 : i32
    return %arg0, %c0_i32 : i32, i32
  }
}

</mosaic_0001>

<llo_original>
// kernel: brumaire_trick_forward.1
$region0: #{brumaire_trick_forward.1}
  #allocation0 [shape = 'u32[]', space=smem, size = 0x4, offset = 0x4, fixed_abs, tag = 'smem constant byte address 0x4 - core index']
  #allocation1 [shape = 'u32[72,128]{1,0:T(1,128)}', space=vmem, size = 0x9000, scoped, tag = 'internal scratch']
  %s0 = inlined_call_operand.vmem [shape: f32[37,32], index: 0, kind: input, shape index: {}]
  %s1 = inlined_call_operand.vmem [shape: bf16[32,32], index: 1, kind: input, shape index: {}]
  %s2 = inlined_call_operand.vmem [shape: f32[1,32], index: 2, kind: input, shape index: {}]
  %s3 = inlined_call_operand.vmem [shape: bf16[32,32], index: 3, kind: input, shape index: {}]
  %s4 = inlined_call_operand.vmem [shape: f32[1,32], index: 4, kind: input, shape index: {}]
  %s5 = inlined_call_operand.vmem [shape: bf16[32,32], index: 5, kind: input, shape index: {}]
  %s6 = inlined_call_operand.vmem [shape: f32[1,32], index: 6, kind: input, shape index: {}]
  %s7 = inlined_call_operand.vmem [shape: bf16[32,10], index: 7, kind: input, shape index: {}]
  %s8 = inlined_call_operand.vmem [shape: f32[1,10], index: 8, kind: input, shape index: {}]
  %s9 = inlined_call_operand.vmem [shape: f32[37,10], index: 9, kind: output, shape index: {}]
  %s10 = sld [smem:[#allocation0]]
  $region117: #{brumaire_trick_forward.1} parent=0
    _
  %s12 = ssub.s32 1, %s10
  %s13 = scalar_select 0, %s12, %s10
  $region1: #{brumaire_trick_forward.1} parent=0
    #allocation2 [shape = 'u8[24576]{0}', space=vmem, size = 0x6000, scoped, tag = 'output window, operand 0']
    loop: start=0, step=1, limit=4
    $region2: #{brumaire_trick_forward.1} parent=1 // loop_pre_header
      _
    $region3: #{brumaire_trick_forward.1} parent=1 // loop_header
      %s15 = sphi 0, %s19
      %p16 = scmp.ge.s32.totalorder %s15, 4
      %s25 = sphi 0, %s27
      %s28 = sphi 0, %s25
      %s29 = sphi 0, %s28
      %s45 = sphi 0, %s29
      %s49 = sphi 0, %s49
      %s51 = sphi 0, %s49
      %s52 = sphi 0, %s51
      %s66 = sphi 0, %s52
      %s70 = sphi 0, %s70
      %s72 = sphi 0, %s70
      %s73 = sphi 0, %s72
      %s87 = sphi 0, %s73
      %s91 = sphi 0, %s91
      %s93 = sphi 0, %s91
      %s94 = sphi 0, %s93
      %s108 = sphi 0, %s94
      %s112 = sphi 0, %s112
      %s114 = sphi 0, %s112
      %s115 = sphi 0, %s114
      %s129 = sphi 0, %s115
      %s133 = sphi 0, %s133
      %s135 = sphi 0, %s133
      %s136 = sphi 0, %s135
      %s150 = sphi 0, %s136
      %s154 = sphi 0, %s154
      %s156 = sphi 0, %s154
      %s157 = sphi 0, %s156
      %s171 = sphi 0, %s157
      %s175 = sphi 0, %s175
      %s177 = sphi 0, %s175
      %s178 = sphi 0, %s177
      %s192 = sphi 0, %s178
      %s196 = sphi 0, %s196
      %s198 = sphi 0, %s196
      %s199 = sphi 0, %s198
      %s213 = sphi 0, %s199
      %s219 = sphi 0, %s221
      %s222 = sphi 0, %s219
      %s223 = sphi 0, %s222
      %s239 = sphi 0, %s223
    $region4: #{brumaire_trick_forward.1} parent=1 // loop_header_branch
      %18 = sbr.rel (%p16) target = $region8
    $region5: #{brumaire_trick_forward.1} parent=1 // loop_body
      %s20 = ssub.s32 %s15, 1
      %s21 = ssub.s32 %s15, 2
      %s22 = sadd.s32 %s15, 1
      %s23 = ssub.s32 %s15, %s22
      %p24 = scmp.eq.s32.totalorder %s23, 0
      %s26 = sadd.s32 %s25, 1
      %s27 = scalar_select %p24, %s25, %s26
      %p30 = pneg %p24
      %p31 = scmp.eq.s32.totalorder %s15, 1
      %p32 = por %p30, %p31
      %p33 = scmp.ne.s32.totalorder %s25, %s28
      %p34 = scmp.eq.s32.totalorder %s15, 0
      %p35 = por %p33, %p34
      %p36 = scmp.ne.s32.totalorder %s25, %s28
      %p37 = scmp.eq.s32.totalorder %s20, 1
      %p38 = por %p36, %p37
      %p39 = scmp.ne.s32.totalorder %s28, %s29
      %p40 = scmp.eq.s32.totalorder %s20, 0
      %p41 = por %p39, %p40
      %p42 = scmp.ne.s32.totalorder %s28, %s29
      %p43 = scmp.eq.s32.totalorder %s21, 1
      %p44 = por %p42, %p43
      %p46 = scmp.ne.s32.totalorder %s29, %s45
      %p47 = scmp.eq.s32.totalorder %s21, 0
      %p48 = por %p46, %p47
      %s50 = sadd.s32 %s49, 1
      %p53 = scmp.eq.s32.totalorder %s15, 1
      %p54 = scmp.ne.s32.totalorder %s49, %s51
      %p55 = scmp.eq.s32.totalorder %s15, 0
      %p56 = por %p54, %p55
      %p57 = scmp.ne.s32.totalorder %s49, %s51
      %p58 = scmp.eq.s32.totalorder %s20, 1
      %p59 = por %p57, %p58
      %p60 = scmp.ne.s32.totalorder %s51, %s52
      %p61 = scmp.eq.s32.totalorder %s20, 0
      %p62 = por %p60, %p61
      %p63 = scmp.ne.s32.totalorder %s51, %s52
      %p64 = scmp.eq.s32.totalorder %s21, 1
      %p65 = por %p63, %p64
      %p67 = scmp.ne.s32.totalorder %s52, %s66
      %p68 = scmp.eq.s32.totalorder %s21, 0
      %p69 = por %p67, %p68
      %s71 = sadd.s32 %s70, 1
      %p74 = scmp.eq.s32.totalorder %s15, 1
      %p75 = scmp.ne.s32.totalorder %s70, %s72
      %p76 = scmp.eq.s32.totalorder %s15, 0
      %p77 = por %p75, %p76
      %p78 = scmp.ne.s32.totalorder %s70, %s72
      %p79 = scmp.eq.s32.totalorder %s20, 1
      %p80 = por %p78, %p79
      %p81 = scmp.ne.s32.totalorder %s72, %s73
      %p82 = scmp.eq.s32.totalorder %s20, 0
      %p83 = por %p81, %p82
      %p84 = scmp.ne.s32.totalorder %s72, %s73
      %p85 = scmp.eq.s32.totalorder %s21, 1
      %p86 = por %p84, %p85
      %p88 = scmp.ne.s32.totalorder %s73, %s87
      %p89 = scmp.eq.s32.totalorder %s21, 0
      %p90 = por %p88, %p89
      %s92 = sadd.s32 %s91, 1
      %p95 = scmp.eq.s32.totalorder %s15, 1
      %p96 = scmp.ne.s32.totalorder %s91, %s93
      %p97 = scmp.eq.s32.totalorder %s15, 0
      %p98 = por %p96, %p97
      %p99 = scmp.ne.s32.totalorder %s91, %s93
      %p100 = scmp.eq.s32.totalorder %s20, 1
      %p101 = por %p99, %p100
      %p102 = scmp.ne.s32.totalorder %s93, %s94
      %p103 = scmp.eq.s32.totalorder %s20, 0
      %p104 = por %p102, %p103
      %p105 = scmp.ne.s32.totalorder %s93, %s94
      %p106 = scmp.eq.s32.totalorder %s21, 1
      %p107 = por %p105, %p106
      %p109 = scmp.ne.s32.totalorder %s94, %s108
      %p110 = scmp.eq.s32.totalorder %s21, 0
      %p111 = por %p109, %p110
      %s113 = sadd.s32 %s112, 1
      %p116 = scmp.eq.s32.totalorder %s15, 1
      %p117 = scmp.ne.s32.totalorder %s112, %s114
      %p118 = scmp.eq.s32.totalorder %s15, 0
      %p119 = por %p117, %p118
      %p120 = scmp.ne.s32.totalorder %s112, %s114
      %p121 = scmp.eq.s32.totalorder %s20, 1
      %p122 = por %p120, %p121
      %p123 = scmp.ne.s32.totalorder %s114, %s115
      %p124 = scmp.eq.s32.totalorder %s20, 0
      %p125 = por %p123, %p124
      %p126 = scmp.ne.s32.totalorder %s114, %s115
      %p127 = scmp.eq.s32.totalorder %s21, 1
      %p128 = por %p126, %p127
      %p130 = scmp.ne.s32.totalorder %s115, %s129
      %p131 = scmp.eq.s32.totalorder %s21, 0
      %p132 = por %p130, %p131
      %s134 = sadd.s32 %s133, 1
      %p137 = scmp.eq.s32.totalorder %s15, 1
      %p138 = scmp.ne.s32.totalorder %s133, %s135
      %p139 = scmp.eq.s32.totalorder %s15, 0
      %p140 = por %p138, %p139
      %p141 = scmp.ne.s32.totalorder %s133, %s135
      %p142 = scmp.eq.s32.totalorder %s20, 1
      %p143 = por %p141, %p142
      %p144 = scmp.ne.s32.totalorder %s135, %s136
      %p145 = scmp.eq.s32.totalorder %s20, 0
      %p146 = por %p144, %p145
      %p147 = scmp.ne.s32.totalorder %s135, %s136
      %p148 = scmp.eq.s32.totalorder %s21, 1
      %p149 = por %p147, %p148
      %p151 = scmp.ne.s32.totalorder %s136, %s150
      %p152 = scmp.eq.s32.totalorder %s21, 0
      %p153 = por %p151, %p152
      %s155 = sadd.s32 %s154, 1
      %p158 = scmp.eq.s32.totalorder %s15, 1
      %p159 = scmp.ne.s32.totalorder %s154, %s156
      %p160 = scmp.eq.s32.totalorder %s15, 0
      %p161 = por %p159, %p160
      %p162 = scmp.ne.s32.totalorder %s154, %s156
      %p163 = scmp.eq.s32.totalorder %s20, 1
      %p164 = por %p162, %p163
      %p165 = scmp.ne.s32.totalorder %s156, %s157
      %p166 = scmp.eq.s32.totalorder %s20, 0
      %p167 = por %p165, %p166
      %p168 = scmp.ne.s32.totalorder %s156, %s157
      %p169 = scmp.eq.s32.totalorder %s21, 1
      %p170 = por %p168, %p169
      %p172 = scmp.ne.s32.totalorder %s157, %s171
      %p173 = scmp.eq.s32.totalorder %s21, 0
      %p174 = por %p172, %p173
      %s176 = sadd.s32 %s175, 1
      %p179 = scmp.eq.s32.totalorder %s15, 1
      %p180 = scmp.ne.s32.totalorder %s175, %s177
      %p181 = scmp.eq.s32.totalorder %s15, 0
      %p182 = por %p180, %p181
      %p183 = scmp.ne.s32.totalorder %s175, %s177
      %p184 = scmp.eq.s32.totalorder %s20, 1
      %p185 = por %p183, %p184
      %p186 = scmp.ne.s32.totalorder %s177, %s178
      %p187 = scmp.eq.s32.totalorder %s20, 0
      %p188 = por %p186, %p187
      %p189 = scmp.ne.s32.totalorder %s177, %s178
      %p190 = scmp.eq.s32.totalorder %s21, 1
      %p191 = por %p189, %p190
      %p193 = scmp.ne.s32.totalorder %s178, %s192
      %p194 = scmp.eq.s32.totalorder %s21, 0
      %p195 = por %p193, %p194
      %s197 = sadd.s32 %s196, 1
      %p200 = scmp.eq.s32.totalorder %s15, 1
      %p201 = scmp.ne.s32.totalorder %s196, %s198
      %p202 = scmp.eq.s32.totalorder %s15, 0
      %p203 = por %p201, %p202
      %p204 = scmp.ne.s32.totalorder %s196, %s198
      %p205 = scmp.eq.s32.totalorder %s20, 1
      %p206 = por %p204, %p205
      %p207 = scmp.ne.s32.totalorder %s198, %s199
      %p208 = scmp.eq.s32.totalorder %s20, 0
      %p209 = por %p207, %p208
      %p210 = scmp.ne.s32.totalorder %s198, %s199
      %p211 = scmp.eq.s32.totalorder %s21, 1
      %p212 = por %p210, %p211
      %p214 = scmp.ne.s32.totalorder %s199, %s213
      %p215 = scmp.eq.s32.totalorder %s21, 0
      %p216 = por %p214, %p215
      %s217 = ssub.s32 %s15, %s22
      %p218 = scmp.eq.s32.totalorder %s217, 0
      %s220 = sadd.s32 %s219, 1
      %s221 = scalar_select %p218, %s219, %s220
      %p224 = pneg %p218
      %p225 = scmp.eq.s32.totalorder %s15, 1
      %p226 = por %p224, %p225
      %p227 = scmp.ne.s32.totalorder %s219, %s222
      %p228 = scmp.eq.s32.totalorder %s15, 0
      %p229 = por %p227, %p228
      %p230 = scmp.ne.s32.totalorder %s219, %s222
      %p231 = scmp.eq.s32.totalorder %s20, 1
      %p232 = por %p230, %p231
      %p233 = scmp.ne.s32.totalorder %s222, %s223
      %p234 = scmp.eq.s32.totalorder %s20, 0
      %p235 = por %p233, %p234
      %p236 = scmp.ne.s32.totalorder %s222, %s223
      %p237 = scmp.eq.s32.totalorder %s21, 1
      %p238 = por %p236, %p237
      %p240 = scmp.ne.s32.totalorder %s223, %s239
      %p241 = scmp.eq.s32.totalorder %s21, 0
      %p242 = por %p240, %p241
      %p243 = scmp.le.s32.totalorder 1, %s15
      %p244 = scmp.lt.s32.totalorder %s15, 3
      %p245 = pnand %p243, %p244
      %p246 = pneg %p245
      // Predicated region
      $region9: #{brumaire_trick_forward.1} parent=5 // pred_check
        _
      $region10: #{brumaire_trick_forward.1} parent=5 // pred_check_branch
        %248 = sbr.rel (%p245) target = $region12
      $region11: #{brumaire_trick_forward.1} parent=5 // pred_region
        %s249 = ssub.s32 %s15, 1
        // Predicated region
        $region13: #{brumaire_trick_forward.1} parent=11 // pred_check
          %p250 = pneg %p62
        $region14: #{brumaire_trick_forward.1} parent=11 // pred_check_branch
          %252 = sbr.rel (%p250) target = $region16
        $region15: #{brumaire_trick_forward.1} parent=11 // pred_region
          _
        $region16: #{brumaire_trick_forward.1} parent=11 // pred_fallthru
          _
        // Predicated region
        $region17: #{brumaire_trick_forward.1} parent=11 // pred_check
          %p253 = pneg %p83
        $region18: #{brumaire_trick_forward.1} parent=11 // pred_check_branch
          %255 = sbr.rel (%p253) target = $region20
        $region19: #{brumaire_trick_forward.1} parent=11 // pred_region
          _
        $region20: #{brumaire_trick_forward.1} parent=11 // pred_fallthru
          _
        // Predicated region
        $region21: #{brumaire_trick_forward.1} parent=11 // pred_check
          %p256 = pneg %p104
        $region22: #{brumaire_trick_forward.1} parent=11 // pred_check_branch
          %258 = sbr.rel (%p256) target = $region24
        $region23: #{brumaire_trick_forward.1} parent=11 // pred_region
          _
        $region24: #{brumaire_trick_forward.1} parent=11 // pred_fallthru
          _
        // Predicated region
        $region25: #{brumaire_trick_forward.1} parent=11 // pred_check
          %p259 = pneg %p125
        $region26: #{brumaire_trick_forward.1} parent=11 // pred_check_branch
          %261 = sbr.rel (%p259) target = $region28
        $region27: #{brumaire_trick_forward.1} parent=11 // pred_region
          _
        $region28: #{brumaire_trick_forward.1} parent=11 // pred_fallthru
          _
        // Predicated region
        $region29: #{brumaire_trick_forward.1} parent=11 // pred_check
          %p262 = pneg %p146
        $region30: #{brumaire_trick_forward.1} parent=11 // pred_check_branch
          %264 = sbr.rel (%p262) target = $region32
        $region31: #{brumaire_trick_forward.1} parent=11 // pred_region
          _
        $region32: #{brumaire_trick_forward.1} parent=11 // pred_fallthru
          _
        // Predicated region
        $region33: #{brumaire_trick_forward.1} parent=11 // pred_check
          %p265 = pneg %p167
        $region34: #{brumaire_trick_forward.1} parent=11 // pred_check_branch
          %267 = sbr.rel (%p265) target = $region36
        $region35: #{brumaire_trick_forward.1} parent=11 // pred_region
          _
        $region36: #{brumaire_trick_forward.1} parent=11 // pred_fallthru
          _
        // Predicated region
        $region37: #{brumaire_trick_forward.1} parent=11 // pred_check
          %p268 = pneg %p188
        $region38: #{brumaire_trick_forward.1} parent=11 // pred_check_branch
          %270 = sbr.rel (%p268) target = $region40
        $region39: #{brumaire_trick_forward.1} parent=11 // pred_region
          _
        $region40: #{brumaire_trick_forward.1} parent=11 // pred_fallthru
          _
        // Predicated region
        $region41: #{brumaire_trick_forward.1} parent=11 // pred_check
          %p271 = pneg %p209
        $region42: #{brumaire_trick_forward.1} parent=11 // pred_check_branch
          %273 = sbr.rel (%p271) target = $region44
        $region43: #{brumaire_trick_forward.1} parent=11 // pred_region
          _
        $region44: #{brumaire_trick_forward.1} parent=11 // pred_fallthru
          _
      $region12: #{brumaire_trick_forward.1} parent=5 // pred_fallthru
        _
      %p274 = scmp.lt.s32.totalorder %s15, 2
      // Predicated region
      $region45: #{brumaire_trick_forward.1} parent=5 // pred_check
        %p275 = pneg %p274
      $region46: #{brumaire_trick_forward.1} parent=5 // pred_check_branch
        %277 = sbr.rel (%p275) target = $region48
      $region47: #{brumaire_trick_forward.1} parent=5 // pred_region
        // Predicated region
        $region49: #{brumaire_trick_forward.1} parent=47 // pred_check
          %p278 = pneg %p35
        $region50: #{brumaire_trick_forward.1} parent=47 // pred_check_branch
          %280 = sbr.rel (%p278) target = $region52
        $region51: #{brumaire_trick_forward.1} parent=47 // pred_region
          %s281 = smul.u32 3, %s15
          %s282 = ssub.s32 5, %s281
          %p283 = scmp.lt.s32.totalorder %s282, 3
          %s284 = scalar_select %p283, %s282, 3
          %s285 = smul.u32 8, %s284
          %p286 = scmp.lt.s32.totalorder %s281, 4
          %s287 = scalar_select %p286, %s281, 4
          %s288 = smul.addr %s287, 8
          %s289 = scalar_lea.vmem %s0, %s288
          %s290 = smul.u32 3, %s15
          %s291 = ssub.s32 5, %s290
          %p292 = scmp.lt.s32.totalorder %s291, 3
          %s293 = scalar_select %p292, %s291, 3
          %s294 = smul.u32 8, %s293
        $region52: #{brumaire_trick_forward.1} parent=47 // pred_fallthru
          _
      $region48: #{brumaire_trick_forward.1} parent=5 // pred_fallthru
        _
      %p295 = scmp.le.s32.totalorder 1, %s15
      %p296 = scmp.lt.s32.totalorder %s15, 3
      %p297 = pnand %p295, %p296
      %p298 = pneg %p297
      // Predicated region
      $region53: #{brumaire_trick_forward.1} parent=5 // pred_check
        _
      $region54: #{brumaire_trick_forward.1} parent=5 // pred_check_branch
        %300 = sbr.rel (%p297) target = $region56
      $region55: #{brumaire_trick_forward.1} parent=5 // pred_region
        %s301 = ssub.s32 %s15, 1
        %s302 = smul.u32 3, %s20
        %s303 = ssub.s32 5, %s302
        %p304 = scmp.lt.s32.totalorder %s303, 3
        %s305 = scalar_select %p304, %s303, 3
        %s306 = smul.u32 8, %s305
        %p307 = scmp.lt.s32.totalorder %s302, 4
        %s308 = scalar_select %p307, %s302, 4
        %s309 = smul.addr %s308, 8
        %s310 = scalar_lea.vmem %s0, %s309
        %p311 = pneg %p41
        %p312 = pneg %p38
        %p313 = pneg %p62
        %p314 = pneg %p59
        %p315 = pneg %p83
        %p316 = pneg %p80
        %p317 = pneg %p104
        %p318 = pneg %p101
        %p319 = pneg %p125
        %p320 = pneg %p122
        %p321 = pneg %p146
        %p322 = pneg %p143
        %p323 = pneg %p167
        %p324 = pneg %p164
        %p325 = pneg %p188
        %p326 = pneg %p185
        %p327 = pneg %p209
        %p328 = pneg %p206
        %p329 = pneg %p235
        %p330 = pneg %p232
        %s331 = sand.u32 %s222, 1
        %s332 = sand.u32 %s222, 1
        %s333 = smul.addr %s332, 24
        %s334 = scalar_lea.vmem [#allocation2], %s333
        %s335 = smul.u32 3, %s20
        %s336 = ssub.s32 5, %s335
        %p337 = scmp.lt.s32.totalorder %s336, 3
        %s338 = scalar_select %p337, %s336, 3
        %s339 = smul.u32 8, %s338
        %p340 = scmp.lt.s32.totalorder %s335, 4
        %s341 = scalar_select %p340, %s335, 4
        %s342 = smul.addr %s341, 8
        %s343 = scalar_lea.vmem %s0, %s342
        %s344 = smul.u32 3, %s20
        %s345 = ssub.s32 5, %s344
        %p346 = scmp.lt.s32.totalorder %s345, 3
        %s347 = scalar_select %p346, %s345, 3
        %s348 = smul.u32 8, %s347
        %s349 = smul.u32 3, %s20
        %s350 = ssub.s32 5, %s349
        %p351 = scmp.lt.s32.totalorder %s350, 3
        %s352 = scalar_select %p351, %s350, 3
        %s353 = smul.u32 8, %s352
        %v355 = vld [vmem:[%s343] sm:$0xff]
        %v356 = vld [vmem:[%s343 + $0x8] sm:$0xff]
        %v357 = vld [vmem:[%s343 + $0x10] sm:$0xff]
        %v358 = vpack.c.bf16 %v356, %v355
        %v359 = vpack.c.bf16 %v357, %v357
        %v360 = vld [vmem:[%s1] sm:$0xf]
        %v361 = vld [vmem:[%s1 + $0x4] sm:$0xf]
        %v362 = vld [vmem:[%s1 + $0x8] sm:$0xf]
        %v363 = vld [vmem:[%s1 + $0xc] sm:$0xf]
        %v364 = vld [vmem:[%s2] sm:$0x1]
        %v366 = vperm.slane %v364, 0
        %v372 = vunpack.c.l.b16 %v360
        %v373 = vunpack.c.l.b16 %v361
        %v374 = vunpack.c.l.b16 %v362
        %v375 = vunpack.c.l.b16 %v363
        %v376 = vpack.c.b16 %v373, %v372
        %v377 = vpack.c.b16 %v375, %v374
        %vm380 = vcmask 261120
        %v382 = vsel %vm380, %v358, 0
        %v385 = vsel %vm380, %v359, 0
        %387 = vmatpush.bf16.msra.mxu0 0
        %388 = vmatpush.bf16.msra.mxu0 0
        %389 = vmatpush.bf16.msra.mxu0 0
        %390 = vmatpush.bf16.msra.mxu0 0
        %391 = vmatpush.bf16.msra.mxu0 0
        %392 = vmatpush.bf16.msra.mxu0 0
        %393 = vmatpush.bf16.msra.mxu0 %v377
        %394 = vmatpush.bf16.msra.mxu0 %v376
        %395 = vmatmul.bf16.gmra.mxu0 %v382
        %v396 = vpop.f32.mrf.mxu0
        %v397 = vadd.f32 %v366, %v396
        %v398 = vpop.f32.mrf.mxu0
        %v399 = vadd.f32 %v366, %v398
        %400 = vmatmul.bf16.gmra.mxu0 %v385
        %v401 = vpop.f32.mrf.mxu0
        %v402 = vadd.f32 %v366, %v401
        %v403 = vpop.f32.mrf.mxu0
        %404 = vdwg.mxu0
        %vm405 = vcmp.ge.f32.partialorder %v397, 0.0
        %vm406 = vcmp.ge.f32.partialorder %v399, 0.0
        %vm407 = vcmp.ge.f32.partialorder %v402, 0.0
        %v408 = vmul.f32 %v397, 0.01
        %v409 = vmul.f32 %v399, 0.01
        %v410 = vmul.f32 %v402, 0.01
        %v411 = vsel %vm405, %v397, %v408
        %v412 = vsel %vm406, %v399, %v409
        %v413 = vsel %vm407, %v402, %v410
        %v414 = vpack.c.bf16 %v412, %v411
        %v415 = vpack.c.bf16 %v413, %v413
        %v416 = vld [vmem:[%s3] sm:$0xf]
        %v417 = vld [vmem:[%s3 + $0x4] sm:$0xf]
        %v418 = vld [vmem:[%s3 + $0x8] sm:$0xf]
        %v419 = vld [vmem:[%s3 + $0xc] sm:$0xf]
        %v420 = vld [vmem:[%s4] sm:$0x1]
        %v422 = vperm.slane %v420, 0
        %v428 = vunpack.c.l.b16 %v416
        %v429 = vunpack.c.l.b16 %v417
        %v430 = vunpack.c.l.b16 %v418
        %v431 = vunpack.c.l.b16 %v419
        %v432 = vpack.c.b16 %v429, %v428
        %v433 = vpack.c.b16 %v431, %v430
        %v437 = vsel %vm380, %v414, 0
        %v440 = vsel %vm380, %v415, 0
        %442 = vmatpush.bf16.msra.mxu0 0
        %443 = vmatpush.bf16.msra.mxu0 0
        %444 = vmatpush.bf16.msra.mxu0 0
        %445 = vmatpush.bf16.msra.mxu0 0
        %446 = vmatpush.bf16.msra.mxu0 0
        %447 = vmatpush.bf16.msra.mxu0 0
        %448 = vmatpush.bf16.msra.mxu0 %v433
        %449 = vmatpush.bf16.msra.mxu0 %v432
        %450 = vmatmul.bf16.gmra.mxu0 %v437
        %v451 = vpop.f32.mrf.mxu0
        %v452 = vadd.f32 %v422, %v451
        %v453 = vpop.f32.mrf.mxu0
        %v454 = vadd.f32 %v422, %v453
        %455 = vmatmul.bf16.gmra.mxu0 %v440
        %v456 = vpop.f32.mrf.mxu0
        %v457 = vadd.f32 %v422, %v456
        %v458 = vpop.f32.mrf.mxu0
        %459 = vdwg.mxu0
        %vm460 = vcmp.ge.f32.partialorder %v452, 0.0
        %vm461 = vcmp.ge.f32.partialorder %v454, 0.0
        %vm462 = vcmp.ge.f32.partialorder %v457, 0.0
        %v463 = vmul.f32 %v452, 0.01
        %v464 = vmul.f32 %v454, 0.01
        %v465 = vmul.f32 %v457, 0.01
        %v466 = vsel %vm460, %v452, %v463
        %v467 = vsel %vm461, %v454, %v464
        %v468 = vsel %vm462, %v457, %v465
        %v469 = vpack.c.bf16 %v467, %v466
        %v470 = vpack.c.bf16 %v468, %v468
        %v471 = vld [vmem:[%s5] sm:$0xf]
        %v472 = vld [vmem:[%s5 + $0x4] sm:$0xf]
        %v473 = vld [vmem:[%s5 + $0x8] sm:$0xf]
        %v474 = vld [vmem:[%s5 + $0xc] sm:$0xf]
        %v475 = vld [vmem:[%s6] sm:$0x1]
        %v477 = vperm.slane %v475, 0
        %v483 = vunpack.c.l.b16 %v471
        %v484 = vunpack.c.l.b16 %v472
        %v485 = vunpack.c.l.b16 %v473
        %v486 = vunpack.c.l.b16 %v474
        %v487 = vpack.c.b16 %v484, %v483
        %v488 = vpack.c.b16 %v486, %v485
        %v492 = vsel %vm380, %v469, 0
        %v495 = vsel %vm380, %v470, 0
        %497 = vmatpush.bf16.msra.mxu0 0
        %498 = vmatpush.bf16.msra.mxu0 0
        %499 = vmatpush.bf16.msra.mxu0 0
        %500 = vmatpush.bf16.msra.mxu0 0
        %501 = vmatpush.bf16.msra.mxu0 0
        %502 = vmatpush.bf16.msra.mxu0 0
        %503 = vmatpush.bf16.msra.mxu0 %v488
        %504 = vmatpush.bf16.msra.mxu0 %v487
        %505 = vmatmul.bf16.gmra.mxu0 %v492
        %v506 = vpop.f32.mrf.mxu0
        %v507 = vadd.f32 %v477, %v506
        %v508 = vpop.f32.mrf.mxu0
        %v509 = vadd.f32 %v477, %v508
        %510 = vmatmul.bf16.gmra.mxu0 %v495
        %v511 = vpop.f32.mrf.mxu0
        %v512 = vadd.f32 %v477, %v511
        %v513 = vpop.f32.mrf.mxu0
        %514 = vdwg.mxu0
        %vm515 = vcmp.ge.f32.partialorder %v507, 0.0
        %vm516 = vcmp.ge.f32.partialorder %v509, 0.0
        %vm517 = vcmp.ge.f32.partialorder %v512, 0.0
        %v518 = vmul.f32 %v507, 0.01
        %v519 = vmul.f32 %v509, 0.01
        %v520 = vmul.f32 %v512, 0.01
        %v521 = vsel %vm515, %v507, %v518
        %v522 = vsel %vm516, %v509, %v519
        %v523 = vsel %vm517, %v512, %v520
        %v524 = vpack.c.bf16 %v522, %v521
        %v525 = vpack.c.bf16 %v523, %v523
        %v526 = vld [vmem:[%s7] sm:$0xf]
        %v527 = vld [vmem:[%s7 + $0x4] sm:$0xf]
        %v528 = vld [vmem:[%s7 + $0x8] sm:$0xf]
        %v529 = vld [vmem:[%s7 + $0xc] sm:$0xf]
        %v530 = vld [vmem:[%s8] sm:$0x1]
        %v532 = vperm.slane %v530, 0
        %v538 = vunpack.c.l.b16 %v526
        %v539 = vunpack.c.l.b16 %v527
        %v540 = vunpack.c.l.b16 %v528
        %v541 = vunpack.c.l.b16 %v529
        %v542 = vpack.c.b16 %v539, %v538
        %v543 = vpack.c.b16 %v541, %v540
        %v547 = vsel %vm380, %v524, 0
        %v550 = vsel %vm380, %v525, 0
        %552 = vmatpush.bf16.msra.mxu0 0
        %553 = vmatpush.bf16.msra.mxu0 0
        %554 = vmatpush.bf16.msra.mxu0 0
        %555 = vmatpush.bf16.msra.mxu0 0
        %556 = vmatpush.bf16.msra.mxu0 0
        %557 = vmatpush.bf16.msra.mxu0 0
        %558 = vmatpush.bf16.msra.mxu0 %v543
        %559 = vmatpush.bf16.msra.mxu0 %v542
        %560 = vmatmul.bf16.gmra.mxu0 %v547
        %v561 = vpop.f32.mrf.mxu0
        %v562 = vadd.f32 %v532, %v561
        %v563 = vpop.f32.mrf.mxu0
        %v564 = vadd.f32 %v532, %v563
        %565 = vmatmul.bf16.gmra.mxu0 %v550
        %v566 = vpop.f32.mrf.mxu0
        %v567 = vadd.f32 %v532, %v566
        %v568 = vpop.f32.mrf.mxu0
        %569 = vdwg.mxu0
        %vm570 = vcmask 80896
        %571 = vst.msk [vmem:[%s334] sm:$0xff] %vm570, %v562
        %572 = vst.msk [vmem:[%s334 + $0x8] sm:$0xff] %vm570, %v564
        %573 = vst.msk [vmem:[%s334 + $0x10] sm:$0xff] %vm570, %v567
        %s574 = sand.u32 %s222, 1
        %s575 = sand.u32 %s222, 1
        %s576 = smul.addr %s575, 24
        %s577 = scalar_lea.vmem [#allocation2], %s576
        // Predicated region
        $region57: #{brumaire_trick_forward.1} parent=55 // pred_check
          %p578 = pneg %p232
        $region58: #{brumaire_trick_forward.1} parent=55 // pred_check_branch
          %580 = sbr.rel (%p578) target = $region60
        $region59: #{brumaire_trick_forward.1} parent=55 // pred_region
          %s581 = smul.u32 3, %s20
          %s582 = ssub.s32 5, %s581
          %p583 = scmp.lt.s32.totalorder %s582, 3
          %s584 = scalar_select %p583, %s582, 3
          %s585 = smul.u32 8, %s584
          %p586 = scmp.ne.s32.totalorder 0, %s585
          %s587 = smul.addr %s581, 8
          %s588 = scalar_lea.vmem %s9, %s587
          // Predicated region
          $region61: #{brumaire_trick_forward.1} parent=59 // pred_check
            %p589 = pneg %p586
          $region62: #{brumaire_trick_forward.1} parent=59 // pred_check_branch
            %591 = sbr.rel (%p589) target = $region64
          $region63: #{brumaire_trick_forward.1} parent=59 // pred_region
            // Predicated region
            $region65: #{brumaire_trick_forward.1} parent=63 // pred_check
              _
            $region66: #{brumaire_trick_forward.1} parent=63 // pred_check_branch
              %593 = sbr.rel (0) target = $region68
            $region67: #{brumaire_trick_forward.1} parent=63 // pred_region
              // Predicated region
              $region87: #{brumaire_trick_forward.1} parent=67 // pred_check
                _
              $region88: #{brumaire_trick_forward.1} parent=67 // pred_check_branch
                %648 = sbr.rel (0) target = $region90
              $region89: #{brumaire_trick_forward.1} parent=67 // pred_region
                %s649 = sdiv.u32.pop %s584, 3
                %s650 = srem.u32.pop %s584, 3
                // While loop
                $region91: #{brumaire_trick_forward.1} parent=89 // loop_pre_header
                  _
                $region92: #{brumaire_trick_forward.1} parent=89 // loop_header
                  %s652 = sphi 0, %s654
                  %p653 = scmp.ge.s32.totalorder %s652, %s649
                  %s657 = sphi 0, %s668
                  %s658 = sphi %s577, %s671
                  %s659 = sphi %s588, %s672
                $region93: #{brumaire_trick_forward.1} parent=89 // loop_header_branch
                  %656 = sbr.rel (%p653) target = $region97
                $region94: #{brumaire_trick_forward.1} parent=89 // loop_body
                  %v660 = vld [vmem:[%s658] sm:$0xff]
                  %661 = vst [vmem:[%s659] sm:$0xff] %v660
                  %v662 = vld [vmem:[%s658 + $0x8] sm:$0xff]
                  %663 = vst [vmem:[%s659 + $0x8] sm:$0xff] %v662
                  %v664 = vld [vmem:[%s658 + $0x10] sm:$0xff]
                  %665 = vst [vmem:[%s659 + $0x10] sm:$0xff] %v664
                  %s666 = sadd.s32 1, %s657
                  %p667 = scmp.ge.s32.totalorder %s666, %s649
                  %s668 = scalar_select %p667, 0, %s666
                  %s669 = smul.u32 %s668, 24
                  %s670 = smul.u32 %s668, 24
                  %s671 = scalar_lea.vmem %s577, %s669 [#allocation2]
                  %s672 = scalar_lea.vmem %s588, %s670
                $region95: #{brumaire_trick_forward.1} parent=89 // loop_footer
                  %s654 = sadd.s32 %s652, 1
                $region96: #{brumaire_trick_forward.1} parent=89 // loop_footer_branch
                  %651 = sbr.rel target = $region92
                $region97: #{brumaire_trick_forward.1} parent=89 // loop_exit
                  _
                %s673 = sdiv.u32.pop %s584, 3
                %s674 = srem.u32.pop %s584, 3
                %s675 = smul.u32 %s673, 3
                %s676 = smul.u32 8, %s675
                %s677 = scalar_lea.vmem %s577, %s676 [#allocation2]
                %s678 = smul.u32 8, %s675
                %s679 = scalar_lea.vmem %s588, %s678
                // While loop
                $region98: #{brumaire_trick_forward.1} parent=89 // loop_pre_header
                  _
                $region99: #{brumaire_trick_forward.1} parent=89 // loop_header
                  %s681 = sphi 0, %s683
                  %p682 = scmp.ge.s32.totalorder %s681, %s674
                  %s686 = sphi 0, %s693
                  %s687 = sphi %s677, %s696
                  %s688 = sphi %s679, %s697
                $region100: #{brumaire_trick_forward.1} parent=89 // loop_header_branch
                  %685 = sbr.rel (%p682) target = $region104
                $region101: #{brumaire_trick_forward.1} parent=89 // loop_body
                  %v689 = vld [vmem:[%s687] sm:$0xff]
                  %690 = vst [vmem:[%s688] sm:$0xff] %v689
                  %s691 = sadd.s32 1, %s686
                  %p692 = scmp.ge.s32.totalorder %s691, %s674
                  %s693 = scalar_select %p692, 0, %s691
                  %s694 = smul.u32 %s693, 8
                  %s695 = smul.u32 %s693, 8
                  %s696 = scalar_lea.vmem %s677, %s694 [#allocation2]
                  %s697 = scalar_lea.vmem %s679, %s695
                $region102: #{brumaire_trick_forward.1} parent=89 // loop_footer
                  %s683 = sadd.s32 %s681, 1
                $region103: #{brumaire_trick_forward.1} parent=89 // loop_footer_branch
                  %680 = sbr.rel target = $region99
                $region104: #{brumaire_trick_forward.1} parent=89 // loop_exit
                  _
              $region90: #{brumaire_trick_forward.1} parent=67 // pred_fallthru
                _
              // Predicated region
              $region105: #{brumaire_trick_forward.1} parent=67 // pred_check
                _
              $region106: #{brumaire_trick_forward.1} parent=67 // pred_check_branch
                %699 = sbr.rel target = $region108
              $region107: #{brumaire_trick_forward.1} parent=67 // pred_region
                _
              $region108: #{brumaire_trick_forward.1} parent=67 // pred_fallthru
                _
            $region68: #{brumaire_trick_forward.1} parent=63 // pred_fallthru
              _
            // Predicated region
            $region69: #{brumaire_trick_forward.1} parent=63 // pred_check
              _
            $region70: #{brumaire_trick_forward.1} parent=63 // pred_check_branch
              %595 = sbr.rel target = $region72
            $region71: #{brumaire_trick_forward.1} parent=63 // pred_region
              %s597 = ssub.s32 256, 1
              %s598 = sdiv.u32.pop %s584, 3
              %s599 = srem.u32.pop %s584, 3
              // While loop
              $region73: #{brumaire_trick_forward.1} parent=71 // loop_pre_header
                _
              $region74: #{brumaire_trick_forward.1} parent=71 // loop_header
                %s601 = sphi 0, %s603
                %p602 = scmp.ge.s32.totalorder %s601, %s598
                %s606 = sphi 0, %s617
                %s607 = sphi %s577, %s620
                %s608 = sphi %s588, %s621
              $region75: #{brumaire_trick_forward.1} parent=71 // loop_header_branch
                %605 = sbr.rel (%p602) target = $region79
              $region76: #{brumaire_trick_forward.1} parent=71 // loop_body
                %v609 = vld [vmem:[%s607] sm:%s597]
                %610 = vst [vmem:[%s608] sm:%s597] %v609
                %v611 = vld [vmem:[%s607 + $0x8] sm:%s597]
                %612 = vst [vmem:[%s608 + $0x8] sm:%s597] %v611
                %v613 = vld [vmem:[%s607 + $0x10] sm:%s597]
                %614 = vst [vmem:[%s608 + $0x10] sm:%s597] %v613
                %s615 = sadd.s32 1, %s606
                %p616 = scmp.ge.s32.totalorder %s615, %s598
                %s617 = scalar_select %p616, 0, %s615
                %s618 = smul.u32 %s617, 24
                %s619 = smul.u32 %s617, 24
                %s620 = scalar_lea.vmem %s577, %s618 [#allocation2]
                %s621 = scalar_lea.vmem %s588, %s619
              $region77: #{brumaire_trick_forward.1} parent=71 // loop_footer
                %s603 = sadd.s32 %s601, 1
              $region78: #{brumaire_trick_forward.1} parent=71 // loop_footer_branch
                %600 = sbr.rel target = $region74
              $region79: #{brumaire_trick_forward.1} parent=71 // loop_exit
                _
              %s622 = sdiv.u32.pop %s584, 3
              %s623 = srem.u32.pop %s584, 3
              %s624 = smul.u32 %s622, 3
              %s625 = smul.u32 8, %s624
              %s626 = scalar_lea.vmem %s577, %s625 [#allocation2]
              %s627 = smul.u32 8, %s624
              %s628 = scalar_lea.vmem %s588, %s627
              // While loop
              $region80: #{brumaire_trick_forward.1} parent=71 // loop_pre_header
                _
              $region81: #{brumaire_trick_forward.1} parent=71 // loop_header
                %s630 = sphi 0, %s632
                %p631 = scmp.ge.s32.totalorder %s630, %s623
                %s635 = sphi 0, %s642
                %s636 = sphi %s626, %s645
                %s637 = sphi %s628, %s646
              $region82: #{brumaire_trick_forward.1} parent=71 // loop_header_branch
                %634 = sbr.rel (%p631) target = $region86
              $region83: #{brumaire_trick_forward.1} parent=71 // loop_body
                %v638 = vld [vmem:[%s636] sm:%s597]
                %639 = vst [vmem:[%s637] sm:%s597] %v638
                %s640 = sadd.s32 1, %s635
                %p641 = scmp.ge.s32.totalorder %s640, %s623
                %s642 = scalar_select %p641, 0, %s640
                %s643 = smul.u32 %s642, 8
                %s644 = smul.u32 %s642, 8
                %s645 = scalar_lea.vmem %s626, %s643 [#allocation2]
                %s646 = scalar_lea.vmem %s628, %s644
              $region84: #{brumaire_trick_forward.1} parent=71 // loop_footer
                %s632 = sadd.s32 %s630, 1
              $region85: #{brumaire_trick_forward.1} parent=71 // loop_footer_branch
                %629 = sbr.rel target = $region81
              $region86: #{brumaire_trick_forward.1} parent=71 // loop_exit
                _
            $region72: #{brumaire_trick_forward.1} parent=63 // pred_fallthru
              _
          $region64: #{brumaire_trick_forward.1} parent=59 // pred_fallthru
            _
          %700 = vnop
        $region60: #{brumaire_trick_forward.1} parent=55 // pred_fallthru
          _
      $region56: #{brumaire_trick_forward.1} parent=5 // pred_fallthru
        _
      %p701 = scmp.le.s32.totalorder 2, %s15
      // Predicated region
      $region109: #{brumaire_trick_forward.1} parent=5 // pred_check
        %p702 = pneg %p701
      $region110: #{brumaire_trick_forward.1} parent=5 // pred_check_branch
        %704 = sbr.rel (%p702) target = $region112
      $region111: #{brumaire_trick_forward.1} parent=5 // pred_region
        %s705 = ssub.s32 %s15, 2
        // Predicated region
        $region113: #{brumaire_trick_forward.1} parent=111 // pred_check
          %p706 = pneg %p238
        $region114: #{brumaire_trick_forward.1} parent=111 // pred_check_branch
          %708 = sbr.rel (%p706) target = $region116
        $region115: #{brumaire_trick_forward.1} parent=111 // pred_region
          %s709 = sand.u32 %s223, 1
          %s710 = sand.u32 %s223, 1
          %s711 = smul.addr %s710, 24
          %s712 = scalar_lea.vmem [#allocation2], %s711
        $region116: #{brumaire_trick_forward.1} parent=111 // pred_fallthru
          _
      $region112: #{brumaire_trick_forward.1} parent=5 // pred_fallthru
        _
    $region6: #{brumaire_trick_forward.1} parent=1 // loop_footer
      %s19 = sadd.s32 1, %s15
    $region7: #{brumaire_trick_forward.1} parent=1 // loop_footer_branch
      %14 = sbr.rel target = $region3
    $region8: #{brumaire_trick_forward.1} parent=1 // loop_exit
      _

</llo_original>
